<compile_context>
chip_gen: v5e
topology: v5e:2x2
jax: 0.10.0
libtpu: 0.0.40
codegen_flags: <defaults>
</compile_context>

<pallas_src>
import math

import jax
import jax.numpy as jnp
from jax.experimental import pallas as pl
from jax.experimental.pallas import tpu as pltpu


def _pe_add_kernel(x_ref, pe_ref, o_ref):
    # x_ref / pe_ref / o_ref: (S_tile, D) — leading size-1 batch dim squeezed.
    o_ref[...] = x_ref[...] + pe_ref[...]
    # TODO(synk): dropout with p > 0 would need pltpu.prng_seed /
    # pltpu.prng_random_bits masking; the reference module uses p == 0
    # (identity), so nothing more is done here.


def make_pe_table(d_model: int, max_len: int) -> jnp.ndarray:
    """Deterministic sin/cos positional-encoding table, shape (1, max_len, d_model).

    Matches the PyTorch buffer construction (assumes even d_model, as in the
    reference script's d_model=256).
    """
    position = jnp.arange(0, max_len, dtype=jnp.float32)[:, None]            # (L, 1)
    div_term = jnp.exp(
        jnp.arange(0, d_model, 2, dtype=jnp.float32)
        * (-(math.log(10000.0) / d_model))
    )                                                                         # (D/2,)
    angles = position * div_term                                              # (L, D/2)
    pe = jnp.zeros((max_len, d_model), dtype=jnp.float32)
    pe = pe.at[:, 0::2].set(jnp.sin(angles))
    pe = pe.at[:, 1::2].set(jnp.cos(angles))
    return pe[None, :, :]                                                     # (1, L, D)


def _pick_seq_tile(S: int, D: int, itemsize: int) -> int:
    """Largest sequence tile such that 3 arrays x 2 buffers fits comfortably in VMEM.

    Cap a single tile at ~2 MiB -> working set ~12 MiB, safe on v5e (16 MiB
    scoped default), v6e and v7x (32 MiB scoped default, 64 MiB physical).
    Returned tile either equals S or is a multiple of 8 that divides S, so
    (8, 128) layout constraints hold and there are no ragged blocks.
    """
    max_tile_bytes = 2 * 1024 * 1024
    if S * D * itemsize <= max_tile_bytes:
        return S
    max_rows = max(8, ((max_tile_bytes // (D * itemsize)) // 8) * 8)
    for t in range(min(S, max_rows), 7, -8):
        if S % t == 0:
            return t
    return S  # fallback: full-extent block (always a legal block shape)


def _pe_add_pallas(x: jnp.ndarray, pe_slice: jnp.ndarray) -> jnp.ndarray:
    B, S, D = x.shape
    s_tile = _pick_seq_tile(S, D, jnp.dtype(x.dtype).itemsize)
    num_s_tiles = S // s_tile

    # Batch is the INNER grid axis; PE's block index (0, s, 0) is constant
    # across consecutive inner steps, so Pallas fetches the PE tile once per
    # sequence tile instead of once per (s, b).
    grid = (num_s_tiles, B)

    return pl.pallas_call(
        _pe_add_kernel,
        out_shape=jax.ShapeDtypeStruct((B, S, D), x.dtype),
        grid_spec=pl.GridSpec(
            grid=grid,
            in_specs=[
                pl.BlockSpec((pl.Squeezed(), s_tile, D), lambda s, b: (b, s, 0)),
                pl.BlockSpec((pl.Squeezed(), s_tile, D), lambda s, b: (0, s, 0)),
            ],
            out_specs=pl.BlockSpec((pl.Squeezed(), s_tile, D), lambda s, b: (b, s, 0)),
        ),
        compiler_params=pltpu.CompilerParams(
            # Both axes independent -> v7x shards across its 2 TensorCores.
            dimension_semantics=("parallel", "parallel"),
            # Explicit scoped-VMEM budget so large blocks are accepted on v5e
            # (16 MiB default) without exceeding v7x's 64 MiB physical VMEM.
            vmem_limit_bytes=32 * 1024 * 1024,
        ),
    )(x, pe_slice)


# Below this total size, a plain fused XLA add beats pallas_call launch overhead.
_PALLAS_MIN_BYTES = 1 << 20


def positional_encoding_forward(
    x: jnp.ndarray, pe: jnp.ndarray, *, force_pallas: bool = False
) -> jnp.ndarray:
    """x: (B, S, D);  pe: (1, max_len, D) float32.  Returns x + pe[:, :S]."""
    B, S, D = x.shape
    pe_slice = pe[:, :S, :].astype(x.dtype)  # matches self.pe[:, :x.size(1)]
    if not force_pallas and x.size * x.dtype.itemsize < _PALLAS_MIN_BYTES:
        return x + pe_slice  # tiny input: let XLA fuse it
    return _pe_add_pallas(x, pe_slice)


if __name__ == "__main__":
    # Small, module-consistent shapes: batch=2, seq=8, d_model=256 (as in the
    # reference script), max_len=64 (>= seq, stands in for 5000).
    B, S, D, MAX_LEN = 2, 8, 256, 64

    key = jax.random.PRNGKey(0)
    x = jax.random.normal(key, (B, S, D), dtype=jnp.float32)

    pe = make_pe_table(D, MAX_LEN)  # deterministic "parameter" setup

    # force_pallas=True so the kernel path is exercised even at toy sizes.
    out = positional_encoding_forward(x, pe, force_pallas=True)
    out = jax.block_until_ready(out)

    # Reference check against plain-JAX forward (dropout p=0 -> identity).
    ref = x + pe[:, :S, :]
    assert out.shape == (B, S, D)
    assert jnp.allclose(out, ref, atol=1e-6), "mismatch vs reference"

    print("KERNEL_OK")
</pallas_src>

<mosaic_0001>
module attributes {stable_mosaic.version = 11 : i64} {
  func.func @_pe_add_kernel(%arg0: i32, %arg1: i32, %arg2: memref<1x8x256xf32, #tpu.memory_space<vmem>>, %arg3: memref<1x8x256xf32, #tpu.memory_space<vmem>>, %arg4: memref<1x8x256xf32, #tpu.memory_space<vmem>>) attributes {dimension_semantics = [#tpu.dimension_semantics<parallel>, #tpu.dimension_semantics<parallel>], iteration_bounds = array<i64: 1, 2>, scalar_prefetch = 0 : i64, scratch_operands = 0 : i64, tpu.core_type = #tpu.core_type<tc>, window_params = [{transform_indices = @transform_0, window_bounds = array<i64: 1, 8, 256>}, {transform_indices = @transform_1, window_bounds = array<i64: 1, 8, 256>}, {transform_indices = @transform_2, window_bounds = array<i64: 1, 8, 256>}]} {
    %c0 = arith.constant 0 : index
    %c0_0 = arith.constant 0 : index
    %c0_1 = arith.constant 0 : index
    %0 = vector.load %arg2[%c0, %c0_0, %c0_1] : memref<1x8x256xf32, #tpu.memory_space<vmem>>, vector<1x8x256xf32>
    %1 = vector.shape_cast %0 : vector<1x8x256xf32> to vector<8x256xf32>
    %c0_2 = arith.constant 0 : index
    %c0_3 = arith.constant 0 : index
    %c0_4 = arith.constant 0 : index
    %2 = vector.load %arg3[%c0_2, %c0_3, %c0_4] : memref<1x8x256xf32, #tpu.memory_space<vmem>>, vector<1x8x256xf32>
    %3 = vector.shape_cast %2 : vector<1x8x256xf32> to vector<8x256xf32>
    %4 = arith.addf %1, %3 : vector<8x256xf32>
    %c0_5 = arith.constant 0 : index
    %c0_6 = arith.constant 0 : index
    %c0_7 = arith.constant 0 : index
    %5 = vector.load %arg4[%c0_5, %c0_6, %c0_7] : memref<1x8x256xf32, #tpu.memory_space<vmem>>, vector<1x8x256xf32>
    %6 = vector.shape_cast %5 : vector<1x8x256xf32> to vector<8x256xf32>
    %7 = vector.shape_cast %4 : vector<8x256xf32> to vector<1x8x256xf32>
    tpu.vector_store %arg4[%c0_5, %c0_6, %c0_7], %7 {strides = array<i32>} : memref<1x8x256xf32, #tpu.memory_space<vmem>>, vector<1x8x256xf32>,
    return
  }
  func.func @transform_0(%arg0: i32, %arg1: i32) -> (i32, i32, i32) {
    %c0_i32 = arith.constant 0 : i32
    %c0_i32_0 = arith.constant 0 : i32
    return %arg1, %arg0, %c0_i32 : i32, i32, i32
  }
  func.func @transform_1(%arg0: i32, %arg1: i32) -> (i32, i32, i32) {
    %c0_i32 = arith.constant 0 : i32
    %c0_i32_0 = arith.constant 0 : i32
    %c0_i32_1 = arith.constant 0 : i32
    return %c0_i32, %arg0, %c0_i32_0 : i32, i32, i32
  }
  func.func @transform_2(%arg0: i32, %arg1: i32) -> (i32, i32, i32) {
    %c0_i32 = arith.constant 0 : i32
    %c0_i32_0 = arith.constant 0 : i32
    return %arg1, %arg0, %c0_i32 : i32, i32, i32
  }
}

</mosaic_0001>

<llo_original>
// kernel: tpu_custom_call.1
$region0: #{tpu_custom_call.1}
  #allocation0 [shape = 'u32[]', space=smem, size = 0x4, offset = 0x4, fixed_abs, tag = 'smem constant byte address 0x4 - core index']
  #allocation1 [shape = 'u32[72,128]{1,0:T(1,128)}', space=vmem, size = 0x9000, scoped, tag = 'internal scratch']
  %s0 = inlined_call_operand.hbm [shape: f32[2,8,256], index: 0, kind: input, shape index: {}]
  %s1 = inlined_call_operand.hbm [shape: f32[1,8,256], index: 1, kind: input, shape index: {}]
  %s2 = inlined_call_operand.hbm [shape: f32[2,8,256], index: 2, kind: output, shape index: {}]
  %s3 = sld [smem:[#allocation0]]
  $region49: #{tpu_custom_call.1} parent=0
    _
  %s5 = ssub.s32 1, %s3
  %s6 = scalar_select 0, %s5, %s3
  $region1: #{tpu_custom_call.1} parent=0
    #allocation2 [shape = 'u8[16384]{0}', space=vmem, size = 0x4000, scoped, tag = 'input window, operand 0']
    #allocation3 [shape = 's32[2]{0}', space=sflag, size = 0x8, scoped, tag = 'scoped memory for tpu_custom_call.1']
    #allocation4 [shape = 's32[2]{0}', space=sflag, size = 0x8, scoped, tag = 'scoped memory for tpu_custom_call.1']
    #allocation5 [shape = 'u8[8192]{0}', space=vmem, size = 0x2000, scoped, tag = 'input window, operand 1, single buffered']
    #allocation6 [shape = 's32[1]{0}', space=sflag, size = 0x4, scoped, tag = 'scoped memory for tpu_custom_call.1']
    #allocation7 [shape = 'u8[16384]{0}', space=vmem, size = 0x4000, scoped, tag = 'output window, operand 0']
    %7 = vsyncpa [#allocation3], 0
    %s8 = scalar_lea.sflag [#allocation3], 1
    %9 = vsyncpa %s8, 0
    %10 = vsyncpa [#allocation6], 0
    %11 = vsyncpa [#allocation4], 0
    %s12 = scalar_lea.sflag [#allocation4], 1
    %13 = vsyncpa %s12, 0
    loop: start=0, step=1, limit=4
    $region2: #{tpu_custom_call.1} parent=1 // loop_pre_header
      _
    $region3: #{tpu_custom_call.1} parent=1 // loop_header
      %s15 = sphi 0, %s19
      %p16 = scmp.ge.s32.totalorder %s15, 4
      %s22 = sphi 0, %s34
      %s23 = sphi 0, %s30
      %s24 = sphi 0, %s22
      %s25 = sphi 0, %s23
      %s26 = sphi 0, %s24
      %s27 = sphi 0, %s25
      %s39 = sphi 0, %s41
      %s42 = sphi 0, %s39
      %s43 = sphi 0, %s42
      %s59 = sphi 0, %s43
      %s65 = sphi 0, %s67
      %s68 = sphi 0, %s65
      %s69 = sphi 0, %s68
      %s85 = sphi 0, %s69
      %s93 = sphi 0, %s95
      %s96 = sphi 0, %s93
      %s97 = sphi 0, %s96
      %s113 = sphi 0, %s97
    $region4: #{tpu_custom_call.1} parent=1 // loop_header_branch
      %18 = sbr.rel (%p16) target = $region8
    $region5: #{tpu_custom_call.1} parent=1 // loop_body
      %s20 = ssub.s32 %s15, 1
      %s21 = ssub.s32 %s15, 2
      %s28 = sadd.s32 1, %s23
      %p29 = scmp.ge.s32.totalorder %s28, 2
      %s30 = scalar_select %p29, 0, %s28
      %s31 = sadd.s32 1, %s22
      %s32 = scalar_select %p29, %s31, %s22
      %p33 = scmp.ge.s32.totalorder %s32, 1
      %s34 = scalar_select %p33, 0, %s32
      %s35 = ssub.s32 %s23, %s30
      %s36 = ssub.s32 %s22, %s34
      %s37 = sor.u32 %s35, %s36
      %p38 = scmp.eq.s32.totalorder %s37, 0
      %s40 = sadd.s32 %s39, 1
      %s41 = scalar_select %p38, %s39, %s40
      %p44 = pneg %p38
      %p45 = scmp.eq.s32.totalorder %s15, 1
      %p46 = por %p44, %p45
      %p47 = scmp.ne.s32.totalorder %s39, %s42
      %p48 = scmp.eq.s32.totalorder %s15, 0
      %p49 = por %p47, %p48
      %p50 = scmp.ne.s32.totalorder %s39, %s42
      %p51 = scmp.eq.s32.totalorder %s20, 1
      %p52 = por %p50, %p51
      %p53 = scmp.ne.s32.totalorder %s42, %s43
      %p54 = scmp.eq.s32.totalorder %s20, 0
      %p55 = por %p53, %p54
      %p56 = scmp.ne.s32.totalorder %s42, %s43
      %p57 = scmp.eq.s32.totalorder %s21, 1
      %p58 = por %p56, %p57
      %p60 = scmp.ne.s32.totalorder %s43, %s59
      %p61 = scmp.eq.s32.totalorder %s21, 0
      %p62 = por %p60, %p61
      %s63 = ssub.s32 %s22, %s34
      %p64 = scmp.eq.s32.totalorder %s63, 0
      %s66 = sadd.s32 %s65, 1
      %s67 = scalar_select %p64, %s65, %s66
      %p70 = pneg %p64
      %p71 = scmp.eq.s32.totalorder %s15, 1
      %p72 = por %p70, %p71
      %p73 = scmp.ne.s32.totalorder %s65, %s68
      %p74 = scmp.eq.s32.totalorder %s15, 0
      %p75 = por %p73, %p74
      %p76 = scmp.ne.s32.totalorder %s65, %s68
      %p77 = scmp.eq.s32.totalorder %s20, 1
      %p78 = por %p76, %p77
      %p79 = scmp.ne.s32.totalorder %s68, %s69
      %p80 = scmp.eq.s32.totalorder %s20, 0
      %p81 = por %p79, %p80
      %p82 = scmp.ne.s32.totalorder %s68, %s69
      %p83 = scmp.eq.s32.totalorder %s21, 1
      %p84 = por %p82, %p83
      %p86 = scmp.ne.s32.totalorder %s69, %s85
      %p87 = scmp.eq.s32.totalorder %s21, 0
      %p88 = por %p86, %p87
      %s89 = ssub.s32 %s23, %s30
      %s90 = ssub.s32 %s22, %s34
      %s91 = sor.u32 %s89, %s90
      %p92 = scmp.eq.s32.totalorder %s91, 0
      %s94 = sadd.s32 %s93, 1
      %s95 = scalar_select %p92, %s93, %s94
      %p98 = pneg %p92
      %p99 = scmp.eq.s32.totalorder %s15, 1
      %p100 = por %p98, %p99
      %p101 = scmp.ne.s32.totalorder %s93, %s96
      %p102 = scmp.eq.s32.totalorder %s15, 0
      %p103 = por %p101, %p102
      %p104 = scmp.ne.s32.totalorder %s93, %s96
      %p105 = scmp.eq.s32.totalorder %s20, 1
      %p106 = por %p104, %p105
      %p107 = scmp.ne.s32.totalorder %s96, %s97
      %p108 = scmp.eq.s32.totalorder %s20, 0
      %p109 = por %p107, %p108
      %p110 = scmp.ne.s32.totalorder %s96, %s97
      %p111 = scmp.eq.s32.totalorder %s21, 1
      %p112 = por %p110, %p111
      %p114 = scmp.ne.s32.totalorder %s97, %s113
      %p115 = scmp.eq.s32.totalorder %s21, 0
      %p116 = por %p114, %p115
      %p117 = scmp.le.s32.totalorder 1, %s15
      %p118 = scmp.lt.s32.totalorder %s15, 3
      %p119 = pnand %p117, %p118
      %p120 = pneg %p119
      // Predicated region
      $region9: #{tpu_custom_call.1} parent=5 // pred_check
        _
      $region10: #{tpu_custom_call.1} parent=5 // pred_check_branch
        %122 = sbr.rel (%p119) target = $region12
      $region11: #{tpu_custom_call.1} parent=5 // pred_region
        %s123 = ssub.s32 %s15, 1
        // Predicated region
        $region13: #{tpu_custom_call.1} parent=11 // pred_check
          %p124 = pneg %p81
        $region14: #{tpu_custom_call.1} parent=11 // pred_check_branch
          %126 = sbr.rel (%p124) target = $region16
        $region15: #{tpu_custom_call.1} parent=11 // pred_region
          %128 = vsyncadd [#allocation6], 0
          %s129 = smul.addr %s24, 2
          %s130 = smul.addr %s129, 8
          %s131 = scalar_lea.hbm %s1, %s130
          %s133 = sshll.u32 %s131, 4
          %s134 = int_to_ptr.hbm [resolvable:$true] %s133
          %s135 = sshll.u32 [#allocation5], 4
          %s136 = int_to_ptr.vmem [resolvable:$true] %s135
          %138 = dma.hbm_to_vmem [thread:$0]  %s134, 256, %s136, [#allocation6]
        $region16: #{tpu_custom_call.1} parent=11 // pred_fallthru
          _
      $region12: #{tpu_custom_call.1} parent=5 // pred_fallthru
        _
      %p139 = scmp.lt.s32.totalorder %s15, 2
      // Predicated region
      $region17: #{tpu_custom_call.1} parent=5 // pred_check
        %p140 = pneg %p139
      $region18: #{tpu_custom_call.1} parent=5 // pred_check_branch
        %142 = sbr.rel (%p140) target = $region20
      $region19: #{tpu_custom_call.1} parent=5 // pred_region
        // Predicated region
        $region21: #{tpu_custom_call.1} parent=19 // pred_check
          %p143 = pneg %p49
        $region22: #{tpu_custom_call.1} parent=19 // pred_check_branch
          %145 = sbr.rel (%p143) target = $region24
        $region23: #{tpu_custom_call.1} parent=19 // pred_region
          %s146 = sand.u32 %s39, 1
          %s147 = scalar_lea.sflag [#allocation3], %s146
          %s148 = sand.u32 %s39, 1
          %s149 = smul.addr %s148, 16
          %s150 = scalar_lea.vmem [#allocation2], %s149
          %152 = vsyncadd %s147, 0
          %s153 = smul.addr %s22, 2
          %s154 = smul.addr %s23, 2
          %s155 = sadd.s32 %s153, %s154
          %s156 = smul.addr %s155, 8
          %s157 = scalar_lea.hbm %s0, %s156
          %s159 = sshll.u32 %s157, 4
          %s160 = int_to_ptr.hbm [resolvable:$true] %s159
          %s161 = sshll.u32 %s150, 4
          %s162 = int_to_ptr.vmem [resolvable:$true] %s161
          %164 = dma.hbm_to_vmem [thread:$0]  %s160, 256, %s162, %s147
        $region24: #{tpu_custom_call.1} parent=19 // pred_fallthru
          _
      $region20: #{tpu_custom_call.1} parent=5 // pred_fallthru
        _
      %p165 = scmp.le.s32.totalorder 1, %s15
      %p166 = scmp.lt.s32.totalorder %s15, 3
      %p167 = pnand %p165, %p166
      %p168 = pneg %p167
      // Predicated region
      $region25: #{tpu_custom_call.1} parent=5 // pred_check
        _
      $region26: #{tpu_custom_call.1} parent=5 // pred_check_branch
        %170 = sbr.rel (%p167) target = $region28
      $region27: #{tpu_custom_call.1} parent=5 // pred_region
        %s171 = ssub.s32 %s15, 1
        %s172 = sand.u32 %s42, 1
        %s173 = scalar_lea.sflag [#allocation3], %s172
        %s174 = sand.u32 %s42, 1
        %s175 = smul.addr %s174, 16
        %s176 = scalar_lea.vmem [#allocation2], %s175
        // Predicated region
        $region29: #{tpu_custom_call.1} parent=27 // pred_check
          %p177 = pneg %p55
        $region30: #{tpu_custom_call.1} parent=27 // pred_check_branch
          %179 = sbr.rel (%p177) target = $region32
        $region31: #{tpu_custom_call.1} parent=27 // pred_region
          %181 = dma.done %s173, 256
        $region32: #{tpu_custom_call.1} parent=27 // pred_fallthru
          _
        // Predicated region
        $region33: #{tpu_custom_call.1} parent=27 // pred_check
          %p182 = pneg %p81
        $region34: #{tpu_custom_call.1} parent=27 // pred_check_branch
          %184 = sbr.rel (%p182) target = $region36
        $region35: #{tpu_custom_call.1} parent=27 // pred_region
          %186 = dma.done [#allocation6], 256
        $region36: #{tpu_custom_call.1} parent=27 // pred_fallthru
          _
        %s187 = sand.u32 %s42, 1
        %s188 = scalar_lea.sflag [#allocation3], %s187
        %s189 = sand.u32 %s42, 1
        %s190 = smul.addr %s189, 16
        %s191 = scalar_lea.vmem [#allocation2], %s190
        %p192 = pneg %p55
        %p193 = pneg %p52
        %p194 = pneg %p81
        %p195 = pneg %p78
        %p196 = pneg %p109
        %p197 = pneg %p106
        %s198 = sand.u32 %s96, 1
        %s199 = scalar_lea.sflag [#allocation4], %s198
        %s200 = sand.u32 %s96, 1
        %s201 = smul.addr %s200, 16
        %s202 = scalar_lea.vmem [#allocation7], %s201
        %v203 = vld [vmem:[%s176] sm:$0xff]
        %v204 = vld [vmem:[%s176 + $0x8] sm:$0xff]
        %v205 = vld [vmem:[#allocation5] sm:$0xff]
        %v206 = vld [vmem:[#allocation5 + $0x8] sm:$0xff]
        %v207 = vadd.f32 %v203, %v205
        %v208 = vadd.f32 %v204, %v206
        %209 = vst [vmem:[%s202] sm:$0xff] %v207
        %210 = vst [vmem:[%s202 + $0x8] sm:$0xff] %v208
        %s211 = sand.u32 %s96, 1
        %s212 = scalar_lea.sflag [#allocation4], %s211
        %s213 = sand.u32 %s96, 1
        %s214 = smul.addr %s213, 16
        %s215 = scalar_lea.vmem [#allocation7], %s214
        // Predicated region
        $region37: #{tpu_custom_call.1} parent=27 // pred_check
          %p216 = pneg %p106
        $region38: #{tpu_custom_call.1} parent=27 // pred_check_branch
          %218 = sbr.rel (%p216) target = $region40
        $region39: #{tpu_custom_call.1} parent=27 // pred_region
          %220 = vsyncadd %s212, 0
          %s221 = smul.addr %s24, 2
          %s222 = smul.addr %s25, 2
          %s223 = sadd.s32 %s221, %s222
          %s224 = smul.addr %s223, 8
          %s225 = scalar_lea.hbm %s2, %s224
          %s227 = sshll.u32 %s215, 4
          %s228 = int_to_ptr.vmem [resolvable:$true] %s227
          %s229 = sshll.u32 %s225, 4
          %s230 = int_to_ptr.hbm [resolvable:$true] %s229
          %232 = dma.vmem_to_hbm [thread:$0]  %s228, 256, %s230, %s212
        $region40: #{tpu_custom_call.1} parent=27 // pred_fallthru
          _
      $region28: #{tpu_custom_call.1} parent=5 // pred_fallthru
        _
      %p233 = scmp.le.s32.totalorder 2, %s15
      // Predicated region
      $region41: #{tpu_custom_call.1} parent=5 // pred_check
        %p234 = pneg %p233
      $region42: #{tpu_custom_call.1} parent=5 // pred_check_branch
        %236 = sbr.rel (%p234) target = $region44
      $region43: #{tpu_custom_call.1} parent=5 // pred_region
        %s237 = ssub.s32 %s15, 2
        // Predicated region
        $region45: #{tpu_custom_call.1} parent=43 // pred_check
          %p238 = pneg %p112
        $region46: #{tpu_custom_call.1} parent=43 // pred_check_branch
          %240 = sbr.rel (%p238) target = $region48
        $region47: #{tpu_custom_call.1} parent=43 // pred_region
          %s241 = sand.u32 %s97, 1
          %s242 = scalar_lea.sflag [#allocation4], %s241
          %s243 = sand.u32 %s97, 1
          %s244 = smul.addr %s243, 16
          %s245 = scalar_lea.vmem [#allocation7], %s244
          %247 = dma.done %s242, 256
        $region48: #{tpu_custom_call.1} parent=43 // pred_fallthru
          _
      $region44: #{tpu_custom_call.1} parent=5 // pred_fallthru
        _
    $region6: #{tpu_custom_call.1} parent=1 // loop_footer
      %s19 = sadd.s32 1, %s15
    $region7: #{tpu_custom_call.1} parent=1 // loop_footer_branch
      %14 = sbr.rel target = $region3
    $region8: #{tpu_custom_call.1} parent=1 // loop_exit
      _
    %248 = vsyncpa [#allocation3], 1
    %s249 = scalar_lea.sflag [#allocation3], 1
    %250 = vsyncpa %s249, 1
    %251 = vsyncpa [#allocation6], 1
    %252 = vsyncpa [#allocation4], 1
    %s253 = scalar_lea.sflag [#allocation4], 1
    %254 = vsyncpa %s253, 1

</llo_original>
